<compile_context>
chip_gen: v7x
topology: tpu7x:2x2x1
jax: 0.10.0
libtpu: 0.0.40
codegen_flags: <defaults>
</compile_context>

<pallas_src>
import functools

import jax
import jax.numpy as jnp
from jax.experimental import pallas as pl
from jax.experimental.pallas import tpu as pltpu

_LANE_CHOICES = (1024, 512, 256, 128)
_LANES_MIN = 128
_MIN_PALLAS_BYTES = 1 << 20      # below this, jnp.clip (fusible) wins


# ---------------------------------------------------------------------------
# Kernels
# ---------------------------------------------------------------------------
def _clip_const_kernel(x_ref, o_ref, *, mode, lo, hi):
    """Clip with compile-time-constant limits (no scalar operands)."""
    x = x_ref[...]
    if mode in ("lower_limit", "both"):
        x = jnp.maximum(x, jnp.asarray(lo, dtype=x.dtype))
    if mode in ("upper_limit", "both"):
        x = jnp.minimum(x, jnp.asarray(hi, dtype=x.dtype))
    o_ref[...] = x


def _clip_smem_kernel(lim_ref, x_ref, o_ref, *, mode):
    """Clip with runtime (traced) limits held in a single (2,) SMEM array."""
    x = x_ref[...]
    if mode in ("lower_limit", "both"):
        x = jnp.maximum(x, lim_ref[0].astype(x.dtype))
    if mode in ("upper_limit", "both"):
        x = jnp.minimum(x, lim_ref[1].astype(x.dtype))
    o_ref[...] = x


# ---------------------------------------------------------------------------
# Helpers
# ---------------------------------------------------------------------------
def _is_static_scalar(v):
    return v is None or isinstance(v, (bool, int, float))


def _jnp_clip(x, mode, upper_limit, lower_limit):
    """Fusible fallback for small / ragged tensors (identical semantics)."""
    if mode == "lower_limit":
        return jnp.maximum(x, jnp.asarray(lower_limit, dtype=x.dtype))
    if mode == "upper_limit":
        return jnp.minimum(x, jnp.asarray(upper_limit, dtype=x.dtype))
    return jnp.minimum(jnp.maximum(x, jnp.asarray(lower_limit, dtype=x.dtype)),
                       jnp.asarray(upper_limit, dtype=x.dtype))


@functools.lru_cache(maxsize=1)
def _hw_params():
    """Generation-aware block sizing (per perf review)."""
    kind = ""
    try:
        kind = jax.devices()[0].device_kind.lower()
    except Exception:
        pass
    gen = None
    for g in (7, 6, 5, 4):
        if f"v{g}" in kind:
            gen = g
            break
    if gen is not None and gen >= 7:
        # v7x: 3.2 TB/s HBM per TC -> 8 MiB blocks; 8MiB x 2 bufs x (in+out)
        # = 32 MiB, raise the scoped limit (64 MiB physical per TC).
        return {"block_bytes": 8 << 20, "min_blocks": 2,
                "vmem_limit": 48 << 20}
    if gen == 6:
        # v6e: 4 MiB blocks (16 MiB total, under the 32 MiB scoped default).
        return {"block_bytes": 4 << 20, "min_blocks": 2, "vmem_limit": None}
    # v5e / unknown: scoped VMEM default is only 16 MiB -> stay at 2 MiB.
    return {"block_bytes": 2 << 20, "min_blocks": 2, "vmem_limit": None}


def _choose_tile_rows(rows, lanes, itemsize, block_bytes, min_blocks):
    """Pick a sublane-aligned row tile; never collapse to a single block when
    the row extent allows >= min_blocks (keeps both v7x TCs busy)."""
    packing = max(1, 4 // itemsize)          # 1 for f32, 2 for bf16, 4 for i8
    sublanes = 8 * packing                   # dtype-aware sublane rounding
    tile_rows = block_bytes // (lanes * itemsize)
    tile_rows = max(sublanes, (tile_rows // sublanes) * sublanes)
    if rows <= tile_rows:
        if rows >= min_blocks * sublanes:
            tile_rows = -(-rows // min_blocks)                 # ceil
            tile_rows = -(-tile_rows // sublanes) * sublanes   # round up
        else:
            tile_rows = rows                 # single full-extent block
    return tile_rows


# ---------------------------------------------------------------------------
# Wrapper
# ---------------------------------------------------------------------------
def clip_layer(x, mode, upper_limit=None, lower_limit=None, *,
               donate=False, force_pallas=False):
    """Pallas implementation of ClipLayer.forward (elementwise clamp)."""
    if mode == "lower_limit":
        assert upper_limit is None and lower_limit is not None
    elif mode == "upper_limit":
        assert upper_limit is not None and lower_limit is None
    elif mode == "both":
        assert upper_limit is not None and lower_limit is not None
    else:
        raise ValueError("Invalid mode")

    orig_shape = x.shape
    n = x.size
    itemsize = jnp.dtype(x.dtype).itemsize

    # Small tensors: a standalone pallas_call is pure launch overhead and
    # blocks XLA from fusing this clamp into the producer/consumer conv.
    # Ragged sizes (n % 128 != 0) would need a pad+slice round trip; use the
    # fusible jnp path for both.
    if n == 0 or n % _LANES_MIN != 0 or (
            not force_pallas and n * itemsize < _MIN_PALLAS_BYTES):
        return _jnp_clip(x, mode, upper_limit, lower_limit)

    hw = _hw_params()

    # Widest lane-dense layout that needs no padding (n % 128 == 0 holds).
    lanes = next(c for c in _LANE_CHOICES if n % c == 0)
    x2d = x.reshape(-1, lanes)
    rows = x2d.shape[0]

    tile_rows = _choose_tile_rows(rows, lanes, itemsize,
                                  hw["block_bytes"], hw["min_blocks"])
    grid = ((rows + tile_rows - 1) // tile_rows,)

    x_spec = pl.BlockSpec((tile_rows, lanes), lambda i: (i, 0))
    out_spec = pl.BlockSpec((tile_rows, lanes), lambda i: (i, 0))
    out_shape = jax.ShapeDtypeStruct((rows, lanes), x.dtype)
    cparams = pltpu.CompilerParams(
        dimension_semantics=("parallel",),
        vmem_limit_bytes=hw["vmem_limit"])

    if _is_static_scalar(upper_limit) and _is_static_scalar(lower_limit):
        # Constant-limit fast path: limits baked into the kernel.
        lo = float(lower_limit) if lower_limit is not None else 0.0
        hi = float(upper_limit) if upper_limit is not None else 0.0
        out2d = pl.pallas_call(
            functools.partial(_clip_const_kernel, mode=mode, lo=lo, hi=hi),
            out_shape=out_shape,
            grid_spec=pltpu.PrefetchScalarGridSpec(
                num_scalar_prefetch=0,
                grid=grid,
                in_specs=[x_spec],
                out_specs=out_spec),
            compiler_params=cparams,
            input_output_aliases={0: 0} if donate else {},
        )(x2d)
    else:
        # Traced-limit path: one (2,) float32 SMEM operand (lo, hi).
        lo = lower_limit if lower_limit is not None else 0.0
        hi = upper_limit if upper_limit is not None else 0.0
        limits = jnp.stack([jnp.asarray(lo, jnp.float32),
                            jnp.asarray(hi, jnp.float32)])
        out2d = pl.pallas_call(
            functools.partial(_clip_smem_kernel, mode=mode),
            out_shape=out_shape,
            grid_spec=pltpu.PrefetchScalarGridSpec(
                num_scalar_prefetch=0,
                grid=grid,
                in_specs=[pl.BlockSpec(memory_space=pltpu.SMEM), x_spec],
                out_specs=out_spec),
            compiler_params=cparams,
            input_output_aliases={1: 0} if donate else {},
        )(limits, x2d)

    # TODO(synk): for integer dtypes with non-integer float limits, the limit
    # is truncated to x.dtype here, while torch.clamp compares in a promoted
    # type; boundary values can differ.  (bf16/fp16: limits are rounded to the
    # storage dtype before comparison on both paths.)
    return out2d.reshape(orig_shape)


# ---------------------------------------------------------------------------
# Self-test
# ---------------------------------------------------------------------------
if __name__ == "__main__":
    key = jax.random.PRNGKey(0)
    k1, k2 = jax.random.split(key)

    # Small NCHW activation consistent with the conv-layer context.
    x = jax.random.normal(k1, (2, 4, 16, 16), dtype=jnp.float32)
    lower, upper = -0.5, 0.7

    # --- Pallas path (forced past the small-tensor fallback), const limits. --
    y_lo = jax.block_until_ready(
        clip_layer(x, "lower_limit", lower_limit=lower, force_pallas=True))
    y_hi = jax.block_until_ready(
        clip_layer(x, "upper_limit", upper_limit=upper, force_pallas=True))
    y_both = jax.block_until_ready(
        clip_layer(x, "both", upper_limit=upper, lower_limit=lower,
                   force_pallas=True))
    assert jnp.allclose(y_lo, jnp.maximum(x, lower))
    assert jnp.allclose(y_hi, jnp.minimum(x, upper))
    assert jnp.allclose(y_both, jnp.clip(x, lower, upper))
    assert y_both.shape == x.shape and y_both.dtype == x.dtype

    # --- Default small-tensor fallback (no kernel launch). -------------------
    y_fb = jax.block_until_ready(
        clip_layer(x, "both", upper_limit=upper, lower_limit=lower))
    assert jnp.allclose(y_fb, jnp.clip(x, lower, upper))

    # --- bf16: dtype-aware sublane rounding. ---------------------------------
    x_bf = x.astype(jnp.bfloat16)
    y_bf = jax.block_until_ready(
        clip_layer(x_bf, "both", upper_limit=upper, lower_limit=lower,
                   force_pallas=True))
    ref_bf = jnp.minimum(jnp.maximum(x_bf, jnp.asarray(lower, jnp.bfloat16)),
                         jnp.asarray(upper, jnp.bfloat16))
    assert jnp.allclose(y_bf.astype(jnp.float32), ref_bf.astype(jnp.float32))

    # --- Multi-block grid (>= 2 blocks for the 2-TC split) on 1 MiB input. ---
    x_big = jax.random.normal(k2, (2, 8, 128, 128), dtype=jnp.float32)
    y_big = jax.block_until_ready(
        clip_layer(x_big, "both", upper_limit=upper, lower_limit=lower,
                   force_pallas=True))
    assert jnp.allclose(y_big, jnp.clip(x_big, lower, upper))

    # --- Traced limits under jit (single (2,) SMEM operand). -----------------
    @jax.jit
    def traced_clip(xv, lo, hi):
        return clip_layer(xv, "both", upper_limit=hi, lower_limit=lo,
                          force_pallas=True)

    y_traced = jax.block_until_ready(
        traced_clip(x, jnp.float32(lower), jnp.float32(upper)))
    assert jnp.allclose(y_traced, jnp.clip(x, lower, upper))

    # --- Donated input (output aliases x via input_output_aliases). ----------
    @functools.partial(jax.jit, donate_argnums=0)
    def donated_clip(xv):
        return clip_layer(xv, "both", upper_limit=upper, lower_limit=lower,
                          donate=True, force_pallas=True)

    y_don = jax.block_until_ready(donated_clip(x + 0.0))
    assert jnp.allclose(y_don, jnp.clip(x, lower, upper))

    print("KERNEL_OK")
</pallas_src>

<mosaic_0001>
module attributes {stable_mosaic.version = 11 : i64} {
  func.func @_clip_const_kernel(%arg0: i32, %arg1: memref<2x1024xf32, #tpu.memory_space<vmem>>, %arg2: memref<2x1024xf32, #tpu.memory_space<vmem>>) attributes {dimension_semantics = [#tpu.dimension_semantics<parallel>], iteration_bounds = array<i64: 1>, scalar_prefetch = 0 : i64, scratch_operands = 0 : i64, tpu.core_type = #tpu.core_type<tc>, window_params = [{transform_indices = @transform_0, window_bounds = array<i64: 2, 1024>}, {transform_indices = @transform_1, window_bounds = array<i64: 2, 1024>}]} {
    %c0 = arith.constant 0 : index
    %c0_0 = arith.constant 0 : index
    %0 = vector.load %arg1[%c0, %c0_0] : memref<2x1024xf32, #tpu.memory_space<vmem>>, vector<2x1024xf32>
    %cst = arith.constant -5.000000e-01 : f32
    %1 = vector.broadcast %cst : f32 to vector<2x1024xf32>
    %2 = arith.maximumf %0, %1 : vector<2x1024xf32>
    %c0_1 = arith.constant 0 : index
    %c0_2 = arith.constant 0 : index
    %3 = vector.load %arg2[%c0_1, %c0_2] : memref<2x1024xf32, #tpu.memory_space<vmem>>, vector<2x1024xf32>
    tpu.vector_store %arg2[%c0_1, %c0_2], %2 {strides = array<i32>} : memref<2x1024xf32, #tpu.memory_space<vmem>>, vector<2x1024xf32>,
    return
  }
  func.func @transform_0(%arg0: i32) -> (i32, i32) {
    %c0_i32 = arith.constant 0 : i32
    %c0_i32_0 = arith.constant 0 : i32
    return %arg0, %c0_i32 : i32, i32
  }
  func.func @transform_1(%arg0: i32) -> (i32, i32) {
    %c0_i32 = arith.constant 0 : i32
    %c0_i32_0 = arith.constant 0 : i32
    return %arg0, %c0_i32 : i32, i32
  }
}

</mosaic_0001>

<llo_original>
// kernel: tpu_custom_call.1
$region0: #{tpu_custom_call.1}
  #allocation0 [shape = 'u32[]', space=smem, size = 0x4, offset = 0x4, fixed_abs, tag = 'smem constant byte address 0x4 - core index']
  #allocation1 [shape = 'u32[144,128]{1,0:T(1,128)}', space=vmem, size = 0x12000, scoped, tag = 'internal scratch']
  %s0 = inlined_call_operand.hbm [shape: f32[2,1024], index: 0, kind: input, shape index: {}]
  %s1 = inlined_call_operand.hbm [shape: f32[2,1024], index: 1, kind: output, shape index: {}]
  %s2 = sld [smem:[#allocation0]]
  $region18: #{tpu_custom_call.1} parent=0
    _
  %s4 = ssub.s32 1, %s2
  %s5 = scalar_select 0, %s4, %s2
  $region1: #{tpu_custom_call.1} parent=0
    #allocation2 [shape = 'u8[8192]{0}', space=vmem, size = 0x2000, scoped, tag = 'input window, operand 0, single buffered']
    #allocation3 [shape = 's32[1]{0}', space=sflag, size = 0x4, scoped, tag = 'scoped memory for tpu_custom_call.1']
    #allocation4 [shape = 's32[1]{0}', space=sflag, size = 0x4, scoped, tag = 'scoped memory for tpu_custom_call.1']
    #allocation5 [shape = 'u8[8192]{0}', space=vmem, size = 0x2000, scoped, tag = 'output window, operand 0, single buffered']
    %6 = vsyncpa [#allocation3], 0
    %7 = vsyncpa [#allocation4], 0
    // Predicated region
    $region2: #{tpu_custom_call.1} parent=1 // pred_check
      _
    $region3: #{tpu_custom_call.1} parent=1 // pred_check_branch
      %9 = sbr.rel (0) target = $region5
    $region4: #{tpu_custom_call.1} parent=1 // pred_region
      %s11 = ssub.s32 256, 256
      %12 = vsyncadd [#allocation3], %s11
      %s14 = sshll.u32 [#allocation2], 4
      %s15 = int_to_ptr.vmem [resolvable:$true] %s14
      %17 = dma.hbm_to_vmem [thread:$0]  %s0, 256, %s15, [#allocation3]
    $region5: #{tpu_custom_call.1} parent=1 // pred_fallthru
      _
    // Predicated region
    $region6: #{tpu_custom_call.1} parent=1 // pred_check
      _
    $region7: #{tpu_custom_call.1} parent=1 // pred_check_branch
      %19 = sbr.rel (0) target = $region9
    $region8: #{tpu_custom_call.1} parent=1 // pred_region
      %20 = dma.done [#allocation3], 256
    $region9: #{tpu_custom_call.1} parent=1 // pred_fallthru
      _
    %v21 = vld [vmem:[#allocation2] sm:$0xff]
    %v22 = vld [vmem:[#allocation2 + $0x8] sm:$0xff]
    %v23 = vmax.f32 %v21, -0.5
    %v24 = vmax.f32 %v22, -0.5
    %25 = vst [vmem:[#allocation5] sm:$0xff] %v23
    %26 = vst [vmem:[#allocation5 + $0x8] sm:$0xff] %v24
    // Predicated region
    $region10: #{tpu_custom_call.1} parent=1 // pred_check
      _
    $region11: #{tpu_custom_call.1} parent=1 // pred_check_branch
      %28 = sbr.rel (0) target = $region13
    $region12: #{tpu_custom_call.1} parent=1 // pred_region
      %s30 = ssub.s32 256, 256
      %31 = vsyncadd [#allocation4], %s30
      %s33 = sshll.u32 [#allocation5], 4
      %s34 = int_to_ptr.vmem [resolvable:$true] %s33
      %36 = dma.vmem_to_hbm [thread:$0]  %s34, 256, %s1, [#allocation4]
    $region13: #{tpu_custom_call.1} parent=1 // pred_fallthru
      _
    // Predicated region
    $region14: #{tpu_custom_call.1} parent=1 // pred_check
      _
    $region15: #{tpu_custom_call.1} parent=1 // pred_check_branch
      %38 = sbr.rel (0) target = $region17
    $region16: #{tpu_custom_call.1} parent=1 // pred_region
      %39 = dma.done [#allocation4], 256
    $region17: #{tpu_custom_call.1} parent=1 // pred_fallthru
      _
    %40 = vsyncpa [#allocation3], 1
    %41 = vsyncpa [#allocation4], 1

</llo_original>
